<compile_context>
chip_gen: v6e
topology: v6e:2x2x1
jax: 0.10.0
libtpu: 0.0.40
codegen_flags: <defaults>
</compile_context>

<pallas_src>
import jax
import jax.numpy as jnp
from jax.experimental import pallas as pl
from jax.experimental.pallas import tpu as pltpu


def _round_up(x: int, m: int) -> int:
    return ((x + m - 1) // m) * m


def _pick_tile(dim: int, pref: int, align: int) -> int:
    """Largest tile <= pref that is a multiple of `align` and (if possible)
    divides the aligned dim exactly, so padding/extra grid steps are minimal."""
    dim_r = _round_up(dim, align)
    if dim_r <= pref:
        return dim_r                       # whole (aligned) dim in one tile
    best = align
    for t in range(align, pref + 1, align):
        if dim_r % t == 0:
            best = t
    return best


# ----------------------------------------------------------------------------
# Fast path for out_features == 1: VPU multiply + lane reduce (no MXU).
# ----------------------------------------------------------------------------
def _rowreduce_kernel(x_ref, w_ref, b_ref, o_ref):
    # x_ref: (tm, Kp) f32, w_ref: (1, Kp) f32, b_ref: (1, 1) f32, o_ref: (tm, 1).
    prod = x_ref[...] * w_ref[...]                       # VPU elementwise
    o_ref[...] = (
        jnp.sum(prod, axis=-1, keepdims=True) + b_ref[...]   # XLU lane reduce
    ).astype(o_ref.dtype)


def _rowreduce_forward(x: jax.Array, params: dict, *, tm: int = 256) -> jax.Array:
    out_dtype = x.dtype
    M, K = x.shape
    assert K == params["in_features"]
    w_row = params["w_row"]                # (1, Kp) f32, prepared once
    b = params["bias"]                     # (1, 1)  f32, prepared once
    Kp = w_row.shape[1]

    tm = min(tm, _round_up(M, 8))
    Mp = _round_up(M, tm)
    x_p = jnp.pad(x.astype(jnp.float32), ((0, Mp - M), (0, Kp - K)))

    # True-shape cost estimate (scheduling hint only).
    cost = pl.CostEstimate(
        flops=2 * M * K,
        transcendentals=0,
        bytes_accessed=(M * K + K + 1) * 4 + M * jnp.dtype(out_dtype).itemsize,
    )

    out_p = pl.pallas_call(
        _rowreduce_kernel,
        out_shape=jax.ShapeDtypeStruct((Mp, 1), out_dtype),
        grid_spec=pltpu.PrefetchScalarGridSpec(
            num_scalar_prefetch=0,
            grid=(Mp // tm,),
            in_specs=[
                pl.BlockSpec((tm, Kp), lambda i: (i, 0)),   # x rows
                pl.BlockSpec((1, Kp), lambda i: (0, 0)),    # weight row (reused)
                pl.BlockSpec((1, 1), lambda i: (0, 0)),     # bias scalar
            ],
            out_specs=pl.BlockSpec((tm, 1), lambda i: (i, 0)),
        ),
        compiler_params=pltpu.CompilerParams(
            dimension_semantics=("parallel",),
        ),
        cost_estimate=cost,
    )(x_p, w_row, b)
    return out_p[:M, :]


# ----------------------------------------------------------------------------
# General tiled matmul path (out_features > 1): P1 + P3 with f32 accumulator.
# ----------------------------------------------------------------------------
def _matmul_kernel(x_ref, w_ref, b_ref, o_ref, acc_ref):
    k = pl.program_id(2)

    @pl.when(k == 0)
    def _init():
        acc_ref[...] = jnp.zeros_like(acc_ref)

    acc_ref[...] += jnp.dot(
        x_ref[...], w_ref[...], preferred_element_type=jnp.float32
    )

    @pl.when(k == pl.num_programs(2) - 1)
    def _finalize():
        o_ref[...] = (acc_ref[...] + b_ref[...]).astype(o_ref.dtype)


def _matmul_forward(x: jax.Array, params: dict, *, tm: int = 256) -> jax.Array:
    out_dtype = x.dtype
    M, K = x.shape
    N = params["out_features"]
    assert K == params["in_features"]
    op_dtype = params["op_dtype"]
    w_p, b_p = params["w"], params["bias"]           # prepared once: (Kp,Np), (1,Np)
    Kp, Np = w_p.shape
    tn, tk = params["tn"], params["tk"]

    # bf16 packs 16 sublanes / vreg -> round M blocks to 16 when using bf16.
    m_align = 16 if op_dtype == jnp.bfloat16 else 8
    tm = min(tm, _round_up(M, m_align))
    Mp = _round_up(M, tm)
    x_p = jnp.pad(x.astype(op_dtype), ((0, Mp - M), (0, Kp - K)))

    grid = (Mp // tm, Np // tn, Kp // tk)

    # Cost estimate from the TRUE problem size, not the padded one.
    op_bytes = jnp.dtype(op_dtype).itemsize
    cost = pl.CostEstimate(
        flops=2 * M * K * N,
        transcendentals=0,
        bytes_accessed=(
            M * K * op_bytes
            + K * N * op_bytes
            + N * 4
            + M * N * jnp.dtype(out_dtype).itemsize
        ),
    )

    # Double-buffered VMEM working set; only raise the scoped-VMEM limit when
    # the tiles actually need it (v5e default is 16 MiB, v7x has 64 MiB/TC).
    vmem_bytes = (
        2 * tm * tk * op_bytes                     # x tiles (double-buffered)
        + 2 * tk * tn * op_bytes                   # W tiles
        + 2 * tm * tn * jnp.dtype(out_dtype).itemsize   # out tiles
        + 2 * tn * 4                               # bias tiles
        + tm * tn * 4                              # f32 accumulator scratch
    )
    vmem_limit = None
    if vmem_bytes > 12 * 1024 * 1024:
        vmem_limit = min(int(vmem_bytes * 3 // 2), 96 * 1024 * 1024)

    out_p = pl.pallas_call(
        _matmul_kernel,
        out_shape=jax.ShapeDtypeStruct((Mp, Np), out_dtype),
        grid_spec=pltpu.PrefetchScalarGridSpec(
            num_scalar_prefetch=0,
            grid=grid,
            in_specs=[
                pl.BlockSpec((tm, tk), lambda i, j, k: (i, k)),   # x tile
                pl.BlockSpec((tk, tn), lambda i, j, k: (k, j)),   # W tile
                pl.BlockSpec((1, tn), lambda i, j, k: (0, j)),    # bias slice
            ],
            out_specs=pl.BlockSpec((tm, tn), lambda i, j, k: (i, j)),
            scratch_shapes=[pltpu.VMEM((tm, tn), jnp.float32)],
        ),
        compiler_params=pltpu.CompilerParams(
            dimension_semantics=("parallel", "parallel", "arbitrary"),
            vmem_limit_bytes=vmem_limit,
        ),
        cost_estimate=cost,
    )(x_p, w_p, b_p)
    return out_p[:M, :N]


# ----------------------------------------------------------------------------
# Public API: one-time param prep (hoisted weight work) + forward dispatch.
# ----------------------------------------------------------------------------
def prepare_head_params(
    weight: jax.Array,
    bias: jax.Array,
    *,
    use_bf16: bool = True,
    tn: int = 512,
    tk: int = 1024,
) -> dict:
    """One-time (model-load) preparation of CustomHead params.

    weight: (out_features, in_features)  -- PyTorch nn.Linear layout
    bias:   (out_features,)
    """
    N, K = weight.shape
    assert bias.shape == (N,)

    if N == 1:
        # Row-reduce path: keep the weight as a single (1, Kp) f32 row.
        Kp = _round_up(K, 128)
        w_row = jnp.pad(weight.astype(jnp.float32), ((0, 0), (0, Kp - K)))
        b = bias.astype(jnp.float32).reshape(1, 1)
        return {
            "kind": "rowreduce",
            "w_row": w_row,
            "bias": b,
            "in_features": K,
            "out_features": N,
        }

    # General path: transpose / cast / pad the weight ONCE so the per-call
    # forward does no weight-side work.  tk is picked so Kp == K when K fits.
    op_dtype = jnp.bfloat16 if use_bf16 else weight.dtype
    tn = _pick_tile(N, tn, 128)
    tk = _pick_tile(K, tk, 128)
    Np = _round_up(N, tn)
    Kp = _round_up(K, tk)
    w_p = jnp.pad(weight.T.astype(op_dtype), ((0, Kp - K), (0, Np - N)))
    b_p = jnp.pad(bias.astype(jnp.float32).reshape(1, N), ((0, 0), (0, Np - N)))
    return {
        "kind": "matmul",
        "w": w_p,
        "bias": b_p,
        "in_features": K,
        "out_features": N,
        "tn": tn,
        "tk": tk,
        "op_dtype": op_dtype,
    }


def custom_head_forward(x: jax.Array, params: dict, *, tm: int = 256) -> jax.Array:
    """Pallas implementation of CustomHead.forward == nn.Linear(in, out).

    x: (B, in_features) -> (B, out_features) = x @ W.T + b
    """
    if params["kind"] == "rowreduce":
        return _rowreduce_forward(x, params, tm=tm)
    return _matmul_forward(x, params, tm=tm)


if __name__ == "__main__":
    key = jax.random.PRNGKey(0)
    k_x, k_w, k_b, k_x2, k_w2, k_b2 = jax.random.split(key, 6)

    # --- Real CustomHead shape: convnext_tiny num_features=768 -> out_channels=1.
    B, in_features, out_features = 8, 768, 1
    bound = 1.0 / (in_features ** 0.5)
    weight = jax.random.uniform(
        k_w, (out_features, in_features), jnp.float32, -bound, bound
    )
    bias = jax.random.uniform(k_b, (out_features,), jnp.float32, -bound, bound)
    x = jax.random.normal(k_x, (B, in_features), jnp.float32)

    params = prepare_head_params(weight, bias)        # hoisted, once per model
    out = jax.block_until_ready(custom_head_forward(x, params))
    ref = x @ weight.T + bias
    assert out.shape == (B, out_features)
    assert jnp.allclose(out, ref, atol=1e-4, rtol=1e-4), "row-reduce path mismatch"

    # --- Exercise the general tiled path (padding on M/K/N, bf16 MXU, f32 acc).
    B2, K2, N2 = 50, 300, 200
    bound2 = 1.0 / (K2 ** 0.5)
    weight2 = jax.random.uniform(k_w2, (N2, K2), jnp.float32, -bound2, bound2)
    bias2 = jax.random.uniform(k_b2, (N2,), jnp.float32, -bound2, bound2)
    x2 = jax.random.normal(k_x2, (B2, K2), jnp.float32)

    params2 = prepare_head_params(weight2, bias2)
    out2 = jax.block_until_ready(custom_head_forward(x2, params2))
    ref2 = x2 @ weight2.T + bias2
    assert out2.shape == (B2, N2)
    assert jnp.allclose(out2, ref2, atol=2e-2, rtol=2e-2), "matmul path mismatch"

    print("KERNEL_OK")
</pallas_src>

<mosaic_0001>
module attributes {stable_mosaic.version = 11 : i64} {
  func.func @_rowreduce_kernel(%arg0: i32, %arg1: memref<8x768xf32, #tpu.memory_space<vmem>>, %arg2: memref<1x768xf32, #tpu.memory_space<vmem>>, %arg3: memref<1x1xf32, #tpu.memory_space<vmem>>, %arg4: memref<8x1xf32, #tpu.memory_space<vmem>>) attributes {dimension_semantics = [#tpu.dimension_semantics<parallel>], iteration_bounds = array<i64: 1>, scalar_prefetch = 0 : i64, scratch_operands = 0 : i64, tpu.core_type = #tpu.core_type<tc>, window_params = [{transform_indices = @transform_0, window_bounds = array<i64: 8, 768>}, {pipeline_mode = #tpu.pipeline_mode<synchronous>, transform_indices = @transform_1, window_bounds = array<i64: 1, 768>}, {pipeline_mode = #tpu.pipeline_mode<synchronous>, transform_indices = @transform_2, window_bounds = array<i64: 1, 1>}, {transform_indices = @transform_3, window_bounds = array<i64: 8, 1>}]} {
    %c0 = arith.constant 0 : index
    %c0_0 = arith.constant 0 : index
    %0 = vector.load %arg1[%c0, %c0_0] : memref<8x768xf32, #tpu.memory_space<vmem>>, vector<8x768xf32>
    %c0_1 = arith.constant 0 : index
    %c0_2 = arith.constant 0 : index
    %1 = vector.load %arg2[%c0_1, %c0_2] : memref<1x768xf32, #tpu.memory_space<vmem>>, vector<1x768xf32>
    %2 = vector.broadcast %1 : vector<1x768xf32> to vector<8x768xf32>
    %3 = arith.mulf %0, %2 : vector<8x768xf32>
    %cst = arith.constant dense<0.000000e+00> : vector<8xf32>
    %4 = vector.multi_reduction <add>, %3, %cst [1] : vector<8x768xf32> to vector<8xf32>
    %5 = vector.shape_cast %4 : vector<8xf32> to vector<8x1xf32>
    %c0_3 = arith.constant 0 : index
    %c0_4 = arith.constant 0 : index
    %6 = vector.load %arg3[%c0_3, %c0_4] : memref<1x1xf32, #tpu.memory_space<vmem>>, vector<1x1xf32>
    %7 = vector.broadcast %6 : vector<1x1xf32> to vector<8x1xf32>
    %8 = arith.addf %5, %7 : vector<8x1xf32>
    %c0_5 = arith.constant 0 : index
    %c0_6 = arith.constant 0 : index
    %9 = vector.load %arg4[%c0_5, %c0_6] : memref<8x1xf32, #tpu.memory_space<vmem>>, vector<8x1xf32>
    tpu.vector_store %arg4[%c0_5, %c0_6], %8 {strides = array<i32>} : memref<8x1xf32, #tpu.memory_space<vmem>>, vector<8x1xf32>,
    return
  }
  func.func @transform_0(%arg0: i32) -> (i32, i32) {
    %c0_i32 = arith.constant 0 : i32
    %c0_i32_0 = arith.constant 0 : i32
    return %arg0, %c0_i32 : i32, i32
  }
  func.func @transform_1(%arg0: i32) -> (i32, i32) {
    %c0_i32 = arith.constant 0 : i32
    %c0_i32_0 = arith.constant 0 : i32
    %c0_i32_1 = arith.constant 0 : i32
    return %c0_i32, %c0_i32_0 : i32, i32
  }
  func.func @transform_2(%arg0: i32) -> (i32, i32) {
    %c0_i32 = arith.constant 0 : i32
    %c0_i32_0 = arith.constant 0 : i32
    %c0_i32_1 = arith.constant 0 : i32
    return %c0_i32, %c0_i32_0 : i32, i32
  }
  func.func @transform_3(%arg0: i32) -> (i32, i32) {
    %c0_i32 = arith.constant 0 : i32
    %c0_i32_0 = arith.constant 0 : i32
    return %arg0, %c0_i32 : i32, i32
  }
}

</mosaic_0001>

<llo_original>
// kernel: tpu_custom_call.1
$region0: #{tpu_custom_call.1}
  #allocation0 [shape = 'u32[]', space=smem, size = 0x4, offset = 0x4, fixed_abs, tag = 'smem constant byte address 0x4 - core index']
  #allocation1 [shape = 'u32[144,128]{1,0:T(1,128)}', space=vmem, size = 0x12000, scoped, tag = 'internal scratch']
  #allocation2 [shape = 'f32[1,1]{1,0:T(1,128)S(1)}', space=vmem, size = 0x200, scoped, tag = 'scoped memory for tpu_custom_call.1']
  %s0 = inlined_call_operand.hbm [shape: f32[8,768], index: 0, kind: input, shape index: {}]
  %s1 = inlined_call_operand.hbm [shape: f32[1,768], index: 1, kind: input, shape index: {}]
  %s2 = inlined_call_operand.<no memory space> [shape: f32[1,1], index: 2, kind: input, shape index: {}]
  %s3 = inlined_call_operand.vmem [shape: f32[8,1], index: 3, kind: output, shape index: {}]
  %s4 = sld [smem:[#allocation0]]
  $region30: #{tpu_custom_call.1} parent=0
    _
  %s6 = ssub.s32 1, %s4
  %s7 = scalar_select 0, %s6, %s4
  %v8 = vstv %s2
  %9 = vst [vmem:[#allocation2] sm:$0x1] %v8
  $region1: #{tpu_custom_call.1} parent=0
    #allocation3 [shape = 'u8[24576]{0}', space=vmem, size = 0x6000, scoped, tag = 'input window, operand 0, single buffered']
    #allocation4 [shape = 's32[1]{0}', space=sflag, size = 0x4, scoped, tag = 'scoped memory for tpu_custom_call.1']
    #allocation5 [shape = 'u8[3072]{0}', space=vmem, size = 0xc00, scoped, tag = 'input window, operand 1, single buffered']
    #allocation6 [shape = 's32[1]{0}', space=sflag, size = 0x4, scoped, tag = 'scoped memory for tpu_custom_call.1']
    %10 = vsyncpa [#allocation4], 0
    %11 = vsyncpa [#allocation6], 0
    // Predicated region
    $region2: #{tpu_custom_call.1} parent=1 // pred_check
      _
    $region3: #{tpu_custom_call.1} parent=1 // pred_check_branch
      %13 = sbr.rel (0) target = $region5
    $region4: #{tpu_custom_call.1} parent=1 // pred_region
      %s15 = ssub.s32 768, 768
      %16 = vsyncadd [#allocation4], %s15
      %s18 = sshll.u32 [#allocation3], 4
      %s19 = int_to_ptr.vmem [resolvable:$true] %s18
      %21 = dma.hbm_to_vmem [thread:$0]  %s0, 768, %s19, [#allocation4]
    $region5: #{tpu_custom_call.1} parent=1 // pred_fallthru
      _
    // Predicated region
    $region6: #{tpu_custom_call.1} parent=1 // pred_check
      _
    $region7: #{tpu_custom_call.1} parent=1 // pred_check_branch
      %23 = sbr.rel (0) target = $region9
    $region8: #{tpu_custom_call.1} parent=1 // pred_region
      %s25 = ssub.s32 96, 96
      %26 = vsyncadd [#allocation6], %s25
      %s28 = sshll.u32 [#allocation5], 4
      %s29 = int_to_ptr.vmem [resolvable:$true] %s28
      %31 = dma.hbm_to_vmem [thread:$0]  %s1, 96, %s29, [#allocation6]
    $region9: #{tpu_custom_call.1} parent=1 // pred_fallthru
      _
    // Predicated region
    $region10: #{tpu_custom_call.1} parent=1 // pred_check
      _
    $region11: #{tpu_custom_call.1} parent=1 // pred_check_branch
      %33 = sbr.rel (0) target = $region13
    $region12: #{tpu_custom_call.1} parent=1 // pred_region
      _
    $region13: #{tpu_custom_call.1} parent=1 // pred_fallthru
      _
    // Predicated region
    $region14: #{tpu_custom_call.1} parent=1 // pred_check
      _
    $region15: #{tpu_custom_call.1} parent=1 // pred_check_branch
      %35 = sbr.rel (0) target = $region17
    $region16: #{tpu_custom_call.1} parent=1 // pred_region
      %36 = dma.done [#allocation4], 768
    $region17: #{tpu_custom_call.1} parent=1 // pred_fallthru
      _
    // Predicated region
    $region18: #{tpu_custom_call.1} parent=1 // pred_check
      _
    $region19: #{tpu_custom_call.1} parent=1 // pred_check_branch
      %38 = sbr.rel (0) target = $region21
    $region20: #{tpu_custom_call.1} parent=1 // pred_region
      %39 = dma.done [#allocation6], 96
    $region21: #{tpu_custom_call.1} parent=1 // pred_fallthru
      _
    %v40 = vld [vmem:[#allocation3] sm:$0xff]
    %v41 = vld [vmem:[#allocation3 + $0x8] sm:$0xff]
    %v42 = vld [vmem:[#allocation3 + $0x10] sm:$0xff]
    %v43 = vld [vmem:[#allocation3 + $0x18] sm:$0xff]
    %v44 = vld [vmem:[#allocation3 + $0x20] sm:$0xff]
    %v45 = vld [vmem:[#allocation3 + $0x28] sm:$0xff]
    %v46 = vld [vmem:[#allocation5] sm:$0x3f]
    %v48 = vlaneseq
    %v49 = vshrl.u32 %v48, 7
    %v50 = vsub.s32 0, %v49
    %v51 = vrot.slane %v46, %v50
    %v52 = vlaneseq
    %v53 = vshrl.u32 %v52, 7
    %v54 = vsub.s32 1, %v53
    %v55 = vrot.slane %v46, %v54
    %v56 = vlaneseq
    %v57 = vshrl.u32 %v56, 7
    %v58 = vsub.s32 2, %v57
    %v59 = vrot.slane %v46, %v58
    %v60 = vlaneseq
    %v61 = vshrl.u32 %v60, 7
    %v62 = vsub.s32 3, %v61
    %v63 = vrot.slane %v46, %v62
    %v64 = vlaneseq
    %v65 = vshrl.u32 %v64, 7
    %v66 = vsub.s32 4, %v65
    %v67 = vrot.slane %v46, %v66
    %v68 = vlaneseq
    %v69 = vshrl.u32 %v68, 7
    %v70 = vsub.s32 5, %v69
    %v71 = vrot.slane %v46, %v70
    %v78 = vmul.f32 %v40, %v51
    %v79 = vmul.f32 %v41, %v55
    %v80 = vmul.f32 %v42, %v59
    %v81 = vmul.f32 %v43, %v63
    %v82 = vmul.f32 %v44, %v67
    %v83 = vmul.f32 %v45, %v71
    %v84 = vadd.f32 %v78, %v79
    %v85 = vadd.f32 %v84, %v80
    %v86 = vadd.f32 %v85, %v81
    %v87 = vadd.f32 %v86, %v82
    %v88 = vadd.f32 %v87, %v83
    %89 = vadd.xlane.f32.xlu0 %v88
    %v90 = vpop.xlane.xlu0 %89
    %v91 = vld [vmem:[#allocation2] sm:$0x1]
    %v93 = vlaneseq
    %v94 = vshrl.u32 %v93, 7
    %v95 = vsub.s32 0, %v94
    %v96 = vrot.slane %v91, %v95
    %v98 = vadd.f32 %v90, %v96
    %vm99 = vcmask 7168
    %100 = vst.msk [vmem:[%s3] sm:$0xff] %vm99, %v98
    // Predicated region
    $region22: #{tpu_custom_call.1} parent=1 // pred_check
      _
    $region23: #{tpu_custom_call.1} parent=1 // pred_check_branch
      %102 = sbr.rel (0) target = $region25
    $region24: #{tpu_custom_call.1} parent=1 // pred_region
      _
    $region25: #{tpu_custom_call.1} parent=1 // pred_fallthru
      _
    // Predicated region
    $region26: #{tpu_custom_call.1} parent=1 // pred_check
      _
    $region27: #{tpu_custom_call.1} parent=1 // pred_check_branch
      %104 = sbr.rel (0) target = $region29
    $region28: #{tpu_custom_call.1} parent=1 // pred_region
      _
    $region29: #{tpu_custom_call.1} parent=1 // pred_fallthru
      _
    %105 = vsyncpa [#allocation4], 1
    %106 = vsyncpa [#allocation6], 1

</llo_original>
